<compile_context>
chip_gen: v7x
topology: tpu7x:2x2x1
jax: 0.10.0
libtpu: 0.0.40
codegen_flags: <defaults>
</compile_context>

<pallas_src>
import jax
import jax.numpy as jnp
from jax.experimental import pallas as pl
from jax.experimental.pallas import tpu as pltpu

_LANE = 128
_MAX_BLOCK_BYTES = 8 * 1024 * 1024     # 8 MiB blocks (ceiling set by v7x's 64 MiB VMEM)
_SMALL_BYTES_THRESHOLD = 1 << 20       # < 1 MiB -> plain XLA (fusion + dispatch cost)


def _vmem_capacity_bytes():
    """Physical VMEM of the local TPU (fallback: 64 MiB, the v7x minimum)."""
    try:
        cap = getattr(pltpu.get_tpu_info(), "vmem_capacity_bytes", None)
        if cap:
            return int(cap)
    except Exception:
        pass
    return 64 * 1024 * 1024


def _default_block_rows(itemsize):
    """Rows of 128 lanes per block: dtype-aware, VMEM-capacity-driven.

    block_bytes ~= min(8 MiB, vmem/8); the double-buffered in+out footprint is
    4x block, i.e. <= vmem/2 (32 MiB on v7x, well under 128 MiB on v5e/v6e).
    Rows are a multiple of the sublane packing (8 / 16 / 32 for 4 / 2 / 1-byte
    dtypes) so blocks stay a fixed number of MiB for every dtype.
    """
    cap = _vmem_capacity_bytes()
    block_bytes = max(1 << 19, min(_MAX_BLOCK_BYTES, cap // 8))
    sub = 8 * max(1, 4 // itemsize)
    tr = block_bytes // (_LANE * itemsize)
    tr = max(sub, (tr // sub) * sub)
    return tr, sub, cap


def _run_pallas_2d(x2d, act_fn, *, block_rows=None, donate_input=False):
    """Elementwise activation over a (rows, 128) array via a tiled Pallas call."""
    rows, _ = x2d.shape
    dtype = x2d.dtype
    itemsize = jnp.dtype(dtype).itemsize
    tr, sub, vmem_cap = _default_block_rows(itemsize)
    if block_rows is not None:
        tr = max(sub, (int(block_rows) // sub) * sub)

    if rows <= tr:
        tr = rows                      # single full-extent block (always legal)
        nblocks = 1
    else:
        nblocks = pl.cdiv(rows, tr)
        if nblocks % 2:                # even block count -> both v7x TCs stay busy
            nblocks += 1
        per = pl.cdiv(rows, nblocks)
        tr = pl.cdiv(per, sub) * sub   # round block rows up to sublane multiple
        nblocks = pl.cdiv(rows, tr)

    block_bytes = tr * _LANE * itemsize
    vmem_limit = int(min(vmem_cap * 3 // 4, 4 * block_bytes + (32 << 20)))

    def kernel(x_ref, o_ref):
        o_ref[...] = act_fn(x_ref[...]).astype(o_ref.dtype)

    cost = pl.CostEstimate(
        flops=rows * _LANE,                       # ~1 op / element (advisory)
        transcendentals=0,
        bytes_accessed=2 * rows * _LANE * itemsize,
    )

    return pl.pallas_call(
        kernel,
        out_shape=jax.ShapeDtypeStruct((rows, _LANE), dtype),
        grid_spec=pltpu.PrefetchScalarGridSpec(
            num_scalar_prefetch=0,
            grid=(nblocks,),
            in_specs=[pl.BlockSpec((tr, _LANE), lambda i: (i, 0))],
            out_specs=pl.BlockSpec((tr, _LANE), lambda i: (i, 0)),
        ),
        compiler_params=pltpu.CompilerParams(
            dimension_semantics=("parallel",),
            vmem_limit_bytes=vmem_limit,
        ),
        cost_estimate=cost,
        input_output_aliases={0: 0} if donate_input else {},
    )(x2d)


def activation_layer(x, act_fn, *, block_rows=None,
                     small_bytes_threshold=_SMALL_BYTES_THRESHOLD,
                     donate_input=False):
    """Apply an elementwise activation to x (any shape) via a Pallas TPU kernel."""
    orig_shape = x.shape
    orig_dtype = x.dtype
    n_elem = x.size
    itemsize = jnp.dtype(orig_dtype).itemsize

    # Tiny tensors: pallas_call dispatch + pipeline warm-up dominates and XLA
    # can fuse the activation into neighbouring ops.  Threshold is in bytes.
    if n_elem * itemsize < small_bytes_threshold:
        return act_fn(x).astype(orig_dtype)

    x_flat = x.reshape(-1)
    rows = n_elem // _LANE
    main = rows * _LANE

    if main == n_elem:
        # Common 128-aligned case: exactly one HBM read + one HBM write.
        y2d = _run_pallas_2d(x_flat.reshape(rows, _LANE), act_fn,
                             block_rows=block_rows, donate_input=donate_input)
        return y2d.reshape(orig_shape)

    # Ragged tail (< 128 elements): Pallas on the aligned prefix, plain XLA on
    # the tail, stitched back together (no full-array pad / post-slice).
    if rows == 0:
        return act_fn(x).astype(orig_dtype)
    y_main = _run_pallas_2d(x_flat[:main].reshape(rows, _LANE), act_fn,
                            block_rows=block_rows).reshape(-1)
    y_tail = act_fn(x_flat[main:]).astype(orig_dtype)
    y_flat = jnp.concatenate([y_main, y_tail], axis=0)
    return y_flat.reshape(orig_shape)


if __name__ == "__main__":
    key = jax.random.PRNGKey(0)
    act = lambda v: jnp.maximum(v, 0.0)  # concrete activation (ReLU); any jnp elementwise fn works

    # 1) Module-shaped input (batch=2, channels=4, 16x16): below the byte
    #    threshold -> plain-XLA bypass.
    x = jax.random.normal(key, (2, 4, 16, 16), dtype=jnp.float32)
    ref = act(x)
    y = jax.block_until_ready(activation_layer(x, act))
    assert y.shape == x.shape and y.dtype == x.dtype
    assert jnp.allclose(y, ref), "mismatch (bypass path)"

    # 2) Same input forced through the Pallas kernel (single full-extent block).
    y_k = jax.block_until_ready(activation_layer(x, act, small_bytes_threshold=0))
    assert y_k.shape == x.shape and y_k.dtype == x.dtype
    assert jnp.allclose(y_k, ref), "mismatch (forced Pallas path)"

    # 3) Element count not divisible by 128 -> aligned-prefix + XLA-tail path.
    k1, k2 = jax.random.split(key)
    x_odd = jax.random.normal(k1, (3, 5, 17, 19), dtype=jnp.float32)
    y_odd = jax.block_until_ready(activation_layer(x_odd, act, small_bytes_threshold=0))
    assert jnp.allclose(y_odd, act(x_odd)), "mismatch (ragged path)"

    # 4) Medium tensor with a small forced block -> multi-block grid exercising
    #    the pipelined path and the even-block-count split.
    x_big = jax.random.normal(k2, (8, 32, 64, 64), dtype=jnp.float32)
    y_big = jax.block_until_ready(activation_layer(x_big, act, block_rows=512))
    assert jnp.allclose(y_big, act(x_big)), "mismatch (multi-block path)"

    # 5) bf16 input through the Pallas path (dtype-aware tile math).
    x_bf16 = jax.random.normal(key, (4, 64, 64, 16), dtype=jnp.bfloat16)
    y_bf16 = jax.block_until_ready(activation_layer(x_bf16, act, small_bytes_threshold=0))
    assert y_bf16.dtype == jnp.bfloat16
    assert jnp.allclose(y_bf16.astype(jnp.float32),
                        act(x_bf16).astype(jnp.float32)), "mismatch (bf16 path)"

    print("KERNEL_OK")
</pallas_src>

<mosaic_0001>
module attributes {stable_mosaic.version = 11 : i64} {
  func.func @kernel(%arg0: i32, %arg1: memref<16x128xf32, #tpu.memory_space<vmem>>, %arg2: memref<16x128xf32, #tpu.memory_space<vmem>>) attributes {dimension_semantics = [#tpu.dimension_semantics<parallel>], iteration_bounds = array<i64: 1>, scalar_prefetch = 0 : i64, scratch_operands = 0 : i64, tpu.core_type = #tpu.core_type<tc>, window_params = [{transform_indices = @transform_0, window_bounds = array<i64: 16, 128>}, {transform_indices = @transform_1, window_bounds = array<i64: 16, 128>}]} {
    %c0 = arith.constant 0 : index
    %c0_0 = arith.constant 0 : index
    %0 = vector.load %arg1[%c0, %c0_0] : memref<16x128xf32, #tpu.memory_space<vmem>>, vector<16x128xf32>
    %cst = arith.constant 0.000000e+00 : f32
    %1 = vector.broadcast %cst : f32 to vector<16x128xf32>
    %2 = arith.maximumf %0, %1 : vector<16x128xf32>
    %c0_1 = arith.constant 0 : index
    %c0_2 = arith.constant 0 : index
    %3 = vector.load %arg2[%c0_1, %c0_2] : memref<16x128xf32, #tpu.memory_space<vmem>>, vector<16x128xf32>
    tpu.vector_store %arg2[%c0_1, %c0_2], %2 {strides = array<i32>} : memref<16x128xf32, #tpu.memory_space<vmem>>, vector<16x128xf32>,
    return
  }
  func.func @transform_0(%arg0: i32) -> (i32, i32) {
    %c0_i32 = arith.constant 0 : i32
    %c0_i32_0 = arith.constant 0 : i32
    return %arg0, %c0_i32 : i32, i32
  }
  func.func @transform_1(%arg0: i32) -> (i32, i32) {
    %c0_i32 = arith.constant 0 : i32
    %c0_i32_0 = arith.constant 0 : i32
    return %arg0, %c0_i32 : i32, i32
  }
}

</mosaic_0001>

<llo_original>
// kernel: tpu_custom_call.1
$region0: #{tpu_custom_call.1}
  #allocation0 [shape = 'u32[]', space=smem, size = 0x4, offset = 0x4, fixed_abs, tag = 'smem constant byte address 0x4 - core index']
  #allocation1 [shape = 'u32[144,128]{1,0:T(1,128)}', space=vmem, size = 0x12000, scoped, tag = 'internal scratch']
  %s0 = inlined_call_operand.hbm [shape: f32[16,128], index: 0, kind: input, shape index: {}]
  %s1 = inlined_call_operand.hbm [shape: f32[16,128], index: 1, kind: output, shape index: {}]
  %s2 = sld [smem:[#allocation0]]
  $region18: #{tpu_custom_call.1} parent=0
    _
  %s4 = ssub.s32 1, %s2
  %s5 = scalar_select 0, %s4, %s2
  $region1: #{tpu_custom_call.1} parent=0
    #allocation2 [shape = 'u8[8192]{0}', space=vmem, size = 0x2000, scoped, tag = 'input window, operand 0, single buffered']
    #allocation3 [shape = 's32[1]{0}', space=sflag, size = 0x4, scoped, tag = 'scoped memory for tpu_custom_call.1']
    #allocation4 [shape = 's32[1]{0}', space=sflag, size = 0x4, scoped, tag = 'scoped memory for tpu_custom_call.1']
    #allocation5 [shape = 'u8[8192]{0}', space=vmem, size = 0x2000, scoped, tag = 'output window, operand 0, single buffered']
    %6 = vsyncpa [#allocation3], 0
    %7 = vsyncpa [#allocation4], 0
    // Predicated region
    $region2: #{tpu_custom_call.1} parent=1 // pred_check
      _
    $region3: #{tpu_custom_call.1} parent=1 // pred_check_branch
      %9 = sbr.rel (0) target = $region5
    $region4: #{tpu_custom_call.1} parent=1 // pred_region
      %s11 = ssub.s32 256, 256
      %12 = vsyncadd [#allocation3], %s11
      %s13 = sshll.u32 [#allocation2], 4
      %s14 = int_to_ptr.vmem [resolvable:$true] %s13
      %19 = dma.hbm_to_vmem [thread:$0]  %s0, 256, %s14, [#allocation3], 128, 128, 8
    $region5: #{tpu_custom_call.1} parent=1 // pred_fallthru
      _
    // Predicated region
    $region6: #{tpu_custom_call.1} parent=1 // pred_check
      _
    $region7: #{tpu_custom_call.1} parent=1 // pred_check_branch
      %21 = sbr.rel (0) target = $region9
    $region8: #{tpu_custom_call.1} parent=1 // pred_region
      %22 = dma.done [#allocation3], 256
    $region9: #{tpu_custom_call.1} parent=1 // pred_fallthru
      _
    %v23 = vld [vmem:[#allocation2] sm:$0xff]
    %v24 = vld [vmem:[#allocation2 + $0x8] sm:$0xff]
    %v25 = vmax.f32 %v23, 0.0
    %v26 = vmax.f32 %v24, 0.0
    %27 = vst [vmem:[#allocation5] sm:$0xff] %v25
    %28 = vst [vmem:[#allocation5 + $0x8] sm:$0xff] %v26
    // Predicated region
    $region10: #{tpu_custom_call.1} parent=1 // pred_check
      _
    $region11: #{tpu_custom_call.1} parent=1 // pred_check_branch
      %30 = sbr.rel (0) target = $region13
    $region12: #{tpu_custom_call.1} parent=1 // pred_region
      %s32 = ssub.s32 256, 256
      %33 = vsyncadd [#allocation4], %s32
      %s34 = sshll.u32 [#allocation5], 4
      %s35 = int_to_ptr.vmem [resolvable:$true] %s34
      %40 = dma.vmem_to_hbm [thread:$0]  %s35, 256, %s1, [#allocation4], 128, 128, 8
    $region13: #{tpu_custom_call.1} parent=1 // pred_fallthru
      _
    // Predicated region
    $region14: #{tpu_custom_call.1} parent=1 // pred_check
      _
    $region15: #{tpu_custom_call.1} parent=1 // pred_check_branch
      %42 = sbr.rel (0) target = $region17
    $region16: #{tpu_custom_call.1} parent=1 // pred_region
      %43 = dma.done [#allocation4], 256
    $region17: #{tpu_custom_call.1} parent=1 // pred_fallthru
      _
    %44 = vsyncpa [#allocation3], 1
    %45 = vsyncpa [#allocation4], 1

</llo_original>
